<compile_context>
chip_gen: v7x
topology: tpu7x:2x2x1
jax: 0.10.0
libtpu: 0.0.40
codegen_flags: <defaults>
</compile_context>

<pallas_src>
import functools
import math

import jax
import jax.numpy as jnp
from jax.experimental import pallas as pl
from jax.experimental.pallas import tpu as pltpu


# ----------------------------- tiling helpers ------------------------------

def _pick_tile(dim, target):
    """Use `target` when it divides `dim`, otherwise fall back to the full dim
    (keeps the (8,128) block constraint satisfiable at tiny test shapes)."""
    return target if dim % target == 0 else dim


# ------------------------------ linear (GEMM) -------------------------------

def _matmul_bias_kernel(x_ref, w_ref, b_ref, o_ref, acc_ref):
    # x: (tm, tk)  w: (tk, tn)  b: (1, tn)  o: (tm, tn)  acc: f32 (tm, tn)
    @pl.when(pl.program_id(2) == 0)
    def _init():
        acc_ref[...] = jnp.zeros(acc_ref.shape, acc_ref.dtype)

    acc_ref[...] += jnp.dot(x_ref[...], w_ref[...],
                            preferred_element_type=jnp.float32)

    @pl.when(pl.program_id(2) == pl.num_programs(2) - 1)
    def _finalize():
        o_ref[...] = (acc_ref[...] + b_ref[...].astype(jnp.float32)).astype(o_ref.dtype)


def pallas_linear(x, w, b, *, tm=256, tn=256, tk=512):
    M, K = x.shape
    _, N = w.shape
    tm = _pick_tile(M, tm)
    tn = _pick_tile(N, tn)
    tk = _pick_tile(K, tk)
    b2 = b.reshape(1, N)

    itemsize = jnp.dtype(x.dtype).itemsize
    cost = pl.CostEstimate(
        flops=2 * M * N * K,
        transcendentals=0,
        bytes_accessed=(M * K + K * N + M * N + N) * itemsize,
    )
    return pl.pallas_call(
        _matmul_bias_kernel,
        out_shape=jax.ShapeDtypeStruct((M, N), x.dtype),
        grid_spec=pltpu.PrefetchScalarGridSpec(
            num_scalar_prefetch=0,
            grid=(M // tm, N // tn, K // tk),
            in_specs=[
                pl.BlockSpec((tm, tk), lambda i, j, kk: (i, kk)),
                pl.BlockSpec((tk, tn), lambda i, j, kk: (kk, j)),
                pl.BlockSpec((1, tn), lambda i, j, kk: (0, j)),
            ],
            out_specs=pl.BlockSpec((tm, tn), lambda i, j, kk: (i, j)),
            scratch_shapes=[pltpu.VMEM((tm, tn), jnp.float32)],
        ),
        compiler_params=pltpu.CompilerParams(
            dimension_semantics=("parallel", "parallel", "arbitrary"),
            vmem_limit_bytes=64 * 1024 * 1024,
        ),
        cost_estimate=cost,
    )(x, w, b2)


# --------------------------- RMSNorm + rotary (RoPE) -------------------------

def _norm_rope_kernel(x_ref, w_ref, cos_ref, sin_ref, o_ref, *, eps):
    # x: (1, ts, Hn, D) ; w: (1,1,1,D) ; cos/sin: (1, ts, 1, D)
    x = x_ref[...].astype(jnp.float32)
    var = jnp.mean(x * x, axis=-1, keepdims=True)
    x = x * jax.lax.rsqrt(var + eps) * w_ref[...].astype(jnp.float32)

    cos = cos_ref[...].astype(jnp.float32)
    sin = sin_ref[...].astype(jnp.float32)
    d = x.shape[-1]
    if d % 128 == 0:
        # lane-aligned head_dim: use the XLU roll + sign mask (frees the VALU)
        sign = jnp.where(
            jax.lax.broadcasted_iota(jnp.int32, x.shape, x.ndim - 1) < d // 2,
            -1.0, 1.0)
        rot = pltpu.roll(x, shift=d // 2, axis=-1) * sign
    else:
        # small / unaligned head_dim (e.g. the toy test): safe concatenate path
        rot = jnp.concatenate([-x[..., d // 2:], x[..., : d // 2]], axis=-1)

    o_ref[...] = (x * cos + rot * sin).astype(o_ref.dtype)


def pallas_norm_rope(x, weight, cos, sin, *, eps=1e-6, ts=256):
    # x: (B, S, Hn, D); weight: (D,); cos/sin: (S, D)
    B, S, Hn, D = x.shape
    ts = _pick_tile(S, ts)
    w4 = weight.reshape(1, 1, 1, D)
    cos4 = cos.reshape(1, S, 1, D)
    sin4 = sin.reshape(1, S, 1, D)
    kernel = functools.partial(_norm_rope_kernel, eps=eps)
    return pl.pallas_call(
        kernel,
        out_shape=jax.ShapeDtypeStruct(x.shape, x.dtype),
        grid_spec=pltpu.PrefetchScalarGridSpec(
            num_scalar_prefetch=0,
            grid=(B, S // ts),
            in_specs=[
                pl.BlockSpec((1, ts, Hn, D), lambda b, s: (b, s, 0, 0)),
                pl.BlockSpec((1, 1, 1, D), lambda b, s: (0, 0, 0, 0)),
                pl.BlockSpec((1, ts, 1, D), lambda b, s: (0, s, 0, 0)),
                pl.BlockSpec((1, ts, 1, D), lambda b, s: (0, s, 0, 0)),
            ],
            out_specs=pl.BlockSpec((1, ts, Hn, D), lambda b, s: (b, s, 0, 0)),
        ),
        compiler_params=pltpu.CompilerParams(
            dimension_semantics=("parallel", "parallel"),
            vmem_limit_bytes=64 * 1024 * 1024,
        ),
    )(x, w4, cos4, sin4)


# -------------------- flash attention (causal, GQA, online softmax) ----------

def _flash_attn_kernel(q_ref, k_ref, v_ref, o_ref, m_sc, l_sc, acc_sc, *, scale, tq, tk):
    # q: (1, n_rep, tq, D)   k/v: (1, 1, tk, D)   o: (1, n_rep, tq, D)
    # m/l: (n_rep, tq, 1) f32   acc: (n_rep, tq, D) f32
    qi = pl.program_id(2)
    ki = pl.program_id(3)
    n_rep = q_ref.shape[1]

    @pl.when(ki == 0)
    def _init():
        m_sc[...] = jnp.full(m_sc.shape, -jnp.inf, m_sc.dtype)
        l_sc[...] = jnp.zeros(l_sc.shape, l_sc.dtype)
        acc_sc[...] = jnp.zeros(acc_sc.shape, acc_sc.dtype)

    # skip kv blocks that are fully above the causal diagonal
    @pl.when(ki * tk <= qi * tq + tq - 1)
    def _compute():
        k = k_ref[0, 0]                     # (tk, D), original dtype (bf16-friendly)
        v = v_ref[0, 0]
        row = qi * tq + jax.lax.broadcasted_iota(jnp.int32, (tq, tk), 0)
        col = ki * tk + jax.lax.broadcasted_iota(jnp.int32, (tq, tk), 1)
        masked = col > row

        for h in range(n_rep):              # static unroll over grouped q heads
            q = q_ref[0, h]                 # (tq, D)
            s = jax.lax.dot_general(
                q, k, (((1,), (1,)), ((), ())),
                preferred_element_type=jnp.float32) * scale
            s = jnp.where(masked, -jnp.inf, s)

            m_prev = m_sc[h]
            m_new = jnp.maximum(m_prev, jnp.max(s, axis=-1, keepdims=True))
            alpha = jnp.exp(m_prev - m_new)
            p = jnp.exp(s - m_new)

            l_sc[h] = alpha * l_sc[h] + jnp.sum(p, axis=-1, keepdims=True)
            acc_sc[h] = alpha * acc_sc[h] + jax.lax.dot_general(
                p.astype(v.dtype), v, (((1,), (0,)), ((), ())),
                preferred_element_type=jnp.float32)
            m_sc[h] = m_new

    @pl.when(ki == pl.num_programs(3) - 1)
    def _finalize():
        inv = pl.reciprocal(l_sc[...], approx=False)   # exact: keep tight tolerance
        o_ref[0] = (acc_sc[...] * inv).astype(o_ref.dtype)


def pallas_flash_attention(q, k, v, *, scale, n_rep, tq=128, tk=256):
    # q: (B, H, S, D);  k/v: (B, KVH, S, D)
    B, H, S, D = q.shape
    KVH = k.shape[1]
    tq = _pick_tile(S, tq)
    tk = _pick_tile(S, tk)
    nq, nk = S // tq, S // tk

    kernel = functools.partial(_flash_attn_kernel, scale=scale, tq=tq, tk=tk)
    itemsize = jnp.dtype(q.dtype).itemsize
    cost = pl.CostEstimate(
        flops=4 * B * H * S * S * D,
        transcendentals=B * H * S * S,
        bytes_accessed=(2 * q.size + k.size + v.size) * itemsize,
    )
    return pl.pallas_call(
        kernel,
        out_shape=jax.ShapeDtypeStruct((B, H, S, D), q.dtype),
        grid_spec=pltpu.PrefetchScalarGridSpec(
            num_scalar_prefetch=0,
            grid=(B, KVH, nq, nk),
            in_specs=[
                pl.BlockSpec((1, n_rep, tq, D), lambda b, g, qi, ki: (b, g, qi, 0)),
                pl.BlockSpec((1, 1, tk, D), lambda b, g, qi, ki: (b, g, ki, 0)),
                pl.BlockSpec((1, 1, tk, D), lambda b, g, qi, ki: (b, g, ki, 0)),
            ],
            out_specs=pl.BlockSpec((1, n_rep, tq, D), lambda b, g, qi, ki: (b, g, qi, 0)),
            scratch_shapes=[
                pltpu.VMEM((n_rep, tq, 1), jnp.float32),
                pltpu.VMEM((n_rep, tq, 1), jnp.float32),
                pltpu.VMEM((n_rep, tq, D), jnp.float32),
            ],
        ),
        compiler_params=pltpu.CompilerParams(
            dimension_semantics=("parallel", "parallel", "parallel", "arbitrary"),
            vmem_limit_bytes=64 * 1024 * 1024,
        ),
        cost_estimate=cost,
    )(q, k, v)


# ------------------------------ module wrapper ------------------------------

def make_params(key, hidden_size, num_heads, num_kv_heads, head_dim, dtype=jnp.float32):
    q_out = num_heads * head_dim
    kv_out = num_kv_heads * head_dim
    ks = jax.random.split(key, 8)

    def lin(kw, kb, fan_in, fan_out):
        bound = 1.0 / math.sqrt(fan_in)
        w = jax.random.uniform(kw, (fan_in, fan_out), dtype, -bound, bound)
        b = jax.random.uniform(kb, (fan_out,), dtype, -bound, bound)
        return w, b

    qw, qb = lin(ks[0], ks[1], hidden_size, q_out)
    kw, kb = lin(ks[2], ks[3], hidden_size, kv_out)
    vw, vb = lin(ks[4], ks[5], hidden_size, kv_out)
    ow, ob = lin(ks[6], ks[7], q_out, hidden_size)
    return dict(
        q_w=qw, q_b=qb, k_w=kw, k_b=kb, v_w=vw, v_b=vb, o_w=ow, o_b=ob,
        q_norm_w=jnp.ones((head_dim,), dtype),   # RMSNorm weights init to 1
        k_norm_w=jnp.ones((head_dim,), dtype),
    )


def rotary_cos_sin(seq_len, head_dim, base=10000.0, dtype=jnp.float32):
    inv_freq = 1.0 / (base ** (jnp.arange(0, head_dim, 2, dtype=jnp.float32) / head_dim))
    pos = jnp.arange(seq_len, dtype=jnp.float32)
    freqs = pos[:, None] * inv_freq[None, :]            # (S, D/2)
    emb = jnp.concatenate([freqs, freqs], axis=-1)      # (S, D)
    return jnp.cos(emb).astype(dtype), jnp.sin(emb).astype(dtype)


def self_attention_forward(params, hidden_states, cos, sin, cu_seqlens, max_s,
                           *, num_heads, num_kv_heads, head_dim,
                           layer_past=None, use_cache=False):
    assert layer_past is None  # TODO(synk): KV-cache path (layer_past concat) not implemented
    assert num_heads % num_kv_heads == 0, "num_heads must be divisible by num_kv_heads"
    B, S, hidden_size = hidden_states.shape
    H, KVH, D = num_heads, num_kv_heads, head_dim
    n_rep = H // KVH
    x2d = hidden_states.reshape(B * S, hidden_size)

    # Fused Q/K/V projection: one tiled GEMM over concatenated weights.
    w_qkv = jnp.concatenate([params["q_w"], params["k_w"], params["v_w"]], axis=1)
    b_qkv = jnp.concatenate([params["q_b"], params["k_b"], params["v_b"]], axis=0)
    qkv = pallas_linear(x2d, w_qkv, b_qkv)                         # (B*S, (H+2*KVH)*D)

    q = qkv[:, : H * D].reshape(B, S, H, D)
    k = qkv[:, H * D: (H + KVH) * D].reshape(B, S, KVH, D)
    v = qkv[:, (H + KVH) * D:].reshape(B, S, KVH, D)

    # Per-head RMSNorm + rotary embedding, tiled over (batch, seq tiles).
    q = pallas_norm_rope(q, params["q_norm_w"], cos, sin)
    k = pallas_norm_rope(k, params["k_norm_w"], cos, sin)

    # TODO(synk): fold these layout transposes into the projection / prep kernels
    q = jnp.transpose(q, (0, 2, 1, 3))   # (B, H, S, D)
    k = jnp.transpose(k, (0, 2, 1, 3))   # (B, KVH, S, D)
    v = jnp.transpose(v, (0, 2, 1, 3))   # (B, KVH, S, D)

    scale = 1.0 / math.sqrt(D)
    attn = pallas_flash_attention(q, k, v, scale=scale, n_rep=n_rep)   # (B, H, S, D)

    attn2d = jnp.transpose(attn, (0, 2, 1, 3)).reshape(B * S, H * D)
    out = pallas_linear(attn2d, params["o_w"], params["o_b"]).reshape(B, S, hidden_size)

    present = None  # use_cache=False
    return out, present


# --------------------------------- reference --------------------------------

def reference_forward(params, hidden_states, cos, sin, *, num_heads, num_kv_heads, head_dim):
    B, S, hidden_size = hidden_states.shape
    x2d = hidden_states.reshape(B * S, hidden_size)

    def lin(x, w, b):
        return x @ w + b

    def rms(x, w, eps=1e-6):
        var = jnp.mean(x * x, axis=-1, keepdims=True)
        return x * jax.lax.rsqrt(var + eps) * w

    def rope(x):
        c = cos[None, :, None, :]
        s = sin[None, :, None, :]
        d = x.shape[-1]
        rot = jnp.concatenate([-x[..., d // 2:], x[..., : d // 2]], axis=-1)
        return x * c + rot * s

    q = lin(x2d, params["q_w"], params["q_b"]).reshape(B, S, num_heads, head_dim)
    k = lin(x2d, params["k_w"], params["k_b"]).reshape(B, S, num_kv_heads, head_dim)
    v = lin(x2d, params["v_w"], params["v_b"]).reshape(B, S, num_kv_heads, head_dim)
    q, k = rope(rms(q, params["q_norm_w"])), rope(rms(k, params["k_norm_w"]))

    n_rep = num_heads // num_kv_heads
    k = jnp.repeat(k, n_rep, axis=2)
    v = jnp.repeat(v, n_rep, axis=2)
    q, k, v = (jnp.transpose(t, (0, 2, 1, 3)) for t in (q, k, v))

    scale = 1.0 / math.sqrt(head_dim)
    s = jnp.einsum("bhqd,bhkd->bhqk", q, k) * scale
    mask = jnp.triu(jnp.ones((S, S)), k=1).astype(s.dtype)
    s = s + mask[None, None] * jnp.finfo(s.dtype).min
    p = jax.nn.softmax(s, axis=-1)
    o = jnp.einsum("bhqk,bhkd->bhqd", p, v)
    o = jnp.transpose(o, (0, 2, 1, 3)).reshape(B * S, num_heads * head_dim)
    return lin(o, params["o_w"], params["o_b"]).reshape(B, S, hidden_size)


# ----------------------------------- main -----------------------------------

if __name__ == "__main__":
    hidden_size = 32
    num_heads = 4
    num_kv_heads = 2
    head_dim = 8
    batch, seq = 2, 8

    key = jax.random.PRNGKey(0)
    k_param, k_x = jax.random.split(key)
    params = make_params(k_param, hidden_size, num_heads, num_kv_heads, head_dim)
    hidden_states = jax.random.normal(k_x, (batch, seq, hidden_size), jnp.float32)
    cos, sin = rotary_cos_sin(seq, head_dim, base=10000.0)
    cu_seqlens = jnp.array([0, seq, 2 * seq], jnp.int32)  # unused by forward
    max_s = seq

    out, present = self_attention_forward(
        params, hidden_states, cos, sin, cu_seqlens, max_s,
        num_heads=num_heads, num_kv_heads=num_kv_heads, head_dim=head_dim,
        layer_past=None, use_cache=False)
    out = jax.block_until_ready(out)

    ref = reference_forward(params, hidden_states, cos, sin,
                            num_heads=num_heads, num_kv_heads=num_kv_heads,
                            head_dim=head_dim)
    assert out.shape == (batch, seq, hidden_size)
    assert present is None
    assert jnp.allclose(out, ref, atol=1e-4, rtol=1e-4), "mismatch vs reference"

    print("KERNEL_OK")
</pallas_src>

<mosaic_0001>
module attributes {stable_mosaic.version = 11 : i64} {
  func.func @_matmul_bias_kernel(%arg0: i32, %arg1: i32, %arg2: i32, %arg3: memref<16x32xf32, #tpu.memory_space<vmem>>, %arg4: memref<32x64xf32, #tpu.memory_space<vmem>>, %arg5: memref<1x64xf32, #tpu.memory_space<vmem>>, %arg6: memref<16x64xf32, #tpu.memory_space<vmem>>, %arg7: memref<16x64xf32, #tpu.memory_space<vmem>>) attributes {dimension_semantics = [#tpu.dimension_semantics<parallel>, #tpu.dimension_semantics<parallel>, #tpu.dimension_semantics<arbitrary>], iteration_bounds = array<i64: 1, 1, 1>, scalar_prefetch = 0 : i64, scratch_operands = 1 : i64, tpu.core_type = #tpu.core_type<tc>, window_params = [{transform_indices = @transform_0, window_bounds = array<i64: 16, 32>}, {transform_indices = @transform_1, window_bounds = array<i64: 32, 64>}, {transform_indices = @transform_2, window_bounds = array<i64: 1, 64>}, {transform_indices = @transform_3, window_bounds = array<i64: 16, 64>}]} {
    %c0_i32 = arith.constant 0 : i32
    %0 = arith.cmpi eq, %arg2, %c0_i32 : i32
    %1 = arith.extui %0 : i1 to i32
    %c0_i32_0 = arith.constant 0 : i32
    %2 = arith.cmpi ne, %1, %c0_i32_0 : i32
    scf.if %2 {
      %cst_10 = arith.constant 0.000000e+00 : f32
      %12 = vector.broadcast %cst_10 : f32 to vector<16x64xf32>
      %c0_11 = arith.constant 0 : index
      %c0_12 = arith.constant 0 : index
      %13 = vector.load %arg7[%c0_11, %c0_12] : memref<16x64xf32, #tpu.memory_space<vmem>>, vector<16x64xf32>
      tpu.vector_store %arg7[%c0_11, %c0_12], %12 {strides = array<i32>} : memref<16x64xf32, #tpu.memory_space<vmem>>, vector<16x64xf32>,
    } else {
    }
    %c0 = arith.constant 0 : index
    %c0_1 = arith.constant 0 : index
    %3 = vector.load %arg7[%c0, %c0_1] : memref<16x64xf32, #tpu.memory_space<vmem>>, vector<16x64xf32>
    %c0_2 = arith.constant 0 : index
    %c0_3 = arith.constant 0 : index
    %4 = vector.load %arg3[%c0_2, %c0_3] : memref<16x32xf32, #tpu.memory_space<vmem>>, vector<16x32xf32>
    %c0_4 = arith.constant 0 : index
    %c0_5 = arith.constant 0 : index
    %5 = vector.load %arg4[%c0_4, %c0_5] : memref<32x64xf32, #tpu.memory_space<vmem>>, vector<32x64xf32>
    %cst = arith.constant dense<0.000000e+00> : vector<16x64xf32>
    %6 = tpu.matmul %4, %5, %cst {dimension_numbers = #tpu.dot_dimension_numbers<[1], [0], [0], [1], [0, 0, 1, 1], [], []>} : vector<16x32xf32>, vector<32x64xf32>, vector<16x64xf32> -> vector<16x64xf32>
    %7 = arith.addf %3, %6 : vector<16x64xf32>
    %c0_6 = arith.constant 0 : index
    %c0_7 = arith.constant 0 : index
    %8 = vector.load %arg7[%c0_6, %c0_7] : memref<16x64xf32, #tpu.memory_space<vmem>>, vector<16x64xf32>
    tpu.vector_store %arg7[%c0_6, %c0_7], %7 {strides = array<i32>} : memref<16x64xf32, #tpu.memory_space<vmem>>, vector<16x64xf32>,
    %c0_i32_8 = arith.constant 0 : i32
    %9 = arith.cmpi eq, %arg2, %c0_i32_8 : i32
    %10 = arith.extui %9 : i1 to i32
    %c0_i32_9 = arith.constant 0 : i32
    %11 = arith.cmpi ne, %10, %c0_i32_9 : i32
    scf.if %11 {
      %c0_10 = arith.constant 0 : index
      %c0_11 = arith.constant 0 : index
      %12 = vector.load %arg7[%c0_10, %c0_11] : memref<16x64xf32, #tpu.memory_space<vmem>>, vector<16x64xf32>
      %c0_12 = arith.constant 0 : index
      %c0_13 = arith.constant 0 : index
      %13 = vector.load %arg5[%c0_12, %c0_13] : memref<1x64xf32, #tpu.memory_space<vmem>>, vector<1x64xf32>
      %14 = vector.broadcast %13 : vector<1x64xf32> to vector<16x64xf32>
      %15 = arith.addf %12, %14 : vector<16x64xf32>
      %c0_14 = arith.constant 0 : index
      %c0_15 = arith.constant 0 : index
      %16 = vector.load %arg6[%c0_14, %c0_15] : memref<16x64xf32, #tpu.memory_space<vmem>>, vector<16x64xf32>
      tpu.vector_store %arg6[%c0_14, %c0_15], %15 {strides = array<i32>} : memref<16x64xf32, #tpu.memory_space<vmem>>, vector<16x64xf32>,
    } else {
    }
    return
  }
  func.func @transform_0(%arg0: i32, %arg1: i32, %arg2: i32) -> (i32, i32) {
    %c0_i32 = arith.constant 0 : i32
    return %arg0, %arg2 : i32, i32
  }
  func.func @transform_1(%arg0: i32, %arg1: i32, %arg2: i32) -> (i32, i32) {
    %c0_i32 = arith.constant 0 : i32
    return %arg2, %arg1 : i32, i32
  }
  func.func @transform_2(%arg0: i32, %arg1: i32, %arg2: i32) -> (i32, i32) {
    %c0_i32 = arith.constant 0 : i32
    %c0_i32_0 = arith.constant 0 : i32
    return %c0_i32, %arg1 : i32, i32
  }
  func.func @transform_3(%arg0: i32, %arg1: i32, %arg2: i32) -> (i32, i32) {
    %c0_i32 = arith.constant 0 : i32
    return %arg0, %arg1 : i32, i32
  }
}

</mosaic_0001>

<llo_original>
// kernel: tpu_custom_call.1
$region0: #{tpu_custom_call.1}
  #allocation0 [shape = 'u32[]', space=smem, size = 0x4, offset = 0x4, fixed_abs, tag = 'smem constant byte address 0x4 - core index']
  #allocation1 [shape = 'u32[144,128]{1,0:T(1,128)}', space=vmem, size = 0x12000, scoped, tag = 'internal scratch']
  #allocation2 [shape = 'f32[16,64]{1,0:T(8,128)}', space=vmem, size = 0x2000, scoped, tag = 'scratch operand']
  %s0 = inlined_call_operand.hbm [shape: f32[16,32], index: 0, kind: input, shape index: {}]
  %s1 = inlined_call_operand.hbm [shape: f32[32,64], index: 1, kind: input, shape index: {}]
  %s2 = inlined_call_operand.hbm [shape: f32[1,64], index: 2, kind: input, shape index: {}]
  %s3 = inlined_call_operand.hbm [shape: f32[16,64], index: 3, kind: output, shape index: {}]
  %s4 = sld [smem:[#allocation0]]
  $region42: #{tpu_custom_call.1} parent=0
    _
  %s6 = ssub.s32 1, %s4
  %s7 = scalar_select 0, %s6, %s4
  $region1: #{tpu_custom_call.1} parent=0
    #allocation3 [shape = 'u8[8192]{0}', space=vmem, size = 0x2000, scoped, tag = 'input window, operand 0, single buffered']
    #allocation4 [shape = 's32[1]{0}', space=sflag, size = 0x4, scoped, tag = 'scoped memory for tpu_custom_call.1']
    #allocation5 [shape = 's32[1]{0}', space=sflag, size = 0x4, scoped, tag = 'scoped memory for tpu_custom_call.1']
    #allocation6 [shape = 'u8[16384]{0}', space=vmem, size = 0x4000, scoped, tag = 'input window, operand 1, single buffered']
    #allocation7 [shape = 's32[1]{0}', space=sflag, size = 0x4, scoped, tag = 'scoped memory for tpu_custom_call.1']
    #allocation8 [shape = 'u8[512]{0}', space=vmem, size = 0x400, scoped, tag = 'input window, operand 2, single buffered']
    #allocation9 [shape = 'u8[8192]{0}', space=vmem, size = 0x2000, scoped, tag = 'output window, operand 0, single buffered']
    %8 = vsyncpa [#allocation4], 0
    %9 = vsyncpa [#allocation7], 0
    %10 = vsyncpa [#allocation5], 0
    // Predicated region
    $region2: #{tpu_custom_call.1} parent=1 // pred_check
      _
    $region3: #{tpu_custom_call.1} parent=1 // pred_check_branch
      %12 = sbr.rel (0) target = $region5
    $region4: #{tpu_custom_call.1} parent=1 // pred_region
      %s14 = ssub.s32 256, 256
      %15 = vsyncadd [#allocation4], %s14
      %s16 = sshll.u32 [#allocation3], 4
      %s17 = int_to_ptr.vmem [resolvable:$true] %s16
      %22 = dma.hbm_to_vmem [thread:$0]  %s0, 256, %s17, [#allocation4], 128, 128, 8
    $region5: #{tpu_custom_call.1} parent=1 // pred_fallthru
      _
    // Predicated region
    $region6: #{tpu_custom_call.1} parent=1 // pred_check
      _
    $region7: #{tpu_custom_call.1} parent=1 // pred_check_branch
      %24 = sbr.rel (0) target = $region9
    $region8: #{tpu_custom_call.1} parent=1 // pred_region
      %s26 = ssub.s32 512, 512
      %27 = vsyncadd [#allocation7], %s26
      %s28 = sshll.u32 [#allocation6], 4
      %s29 = int_to_ptr.vmem [resolvable:$true] %s28
      %34 = dma.hbm_to_vmem [thread:$0]  %s1, 512, %s29, [#allocation7], 128, 128, 8
    $region9: #{tpu_custom_call.1} parent=1 // pred_fallthru
      _
    // Predicated region
    $region10: #{tpu_custom_call.1} parent=1 // pred_check
      _
    $region11: #{tpu_custom_call.1} parent=1 // pred_check_branch
      %36 = sbr.rel (0) target = $region13
    $region12: #{tpu_custom_call.1} parent=1 // pred_region
      %s38 = ssub.s32 16, 16
      %39 = vsyncadd [#allocation7], %s38
      %s41 = sshll.u32 [#allocation8], 4
      %s42 = int_to_ptr.vmem [resolvable:$true] %s41
      %44 = dma.hbm_to_vmem [thread:$0]  %s2, 16, %s42, [#allocation7]
    $region13: #{tpu_custom_call.1} parent=1 // pred_fallthru
      _
    // Predicated region
    $region14: #{tpu_custom_call.1} parent=1 // pred_check
      _
    $region15: #{tpu_custom_call.1} parent=1 // pred_check_branch
      %46 = sbr.rel (0) target = $region17
    $region16: #{tpu_custom_call.1} parent=1 // pred_region
      %47 = dma.done [#allocation4], 256
    $region17: #{tpu_custom_call.1} parent=1 // pred_fallthru
      _
    // Predicated region
    $region18: #{tpu_custom_call.1} parent=1 // pred_check
      _
    $region19: #{tpu_custom_call.1} parent=1 // pred_check_branch
      %49 = sbr.rel (0) target = $region21
    $region20: #{tpu_custom_call.1} parent=1 // pred_region
      %50 = dma.done [#allocation7], 512
    $region21: #{tpu_custom_call.1} parent=1 // pred_fallthru
      _
    // Predicated region
    $region22: #{tpu_custom_call.1} parent=1 // pred_check
      _
    $region23: #{tpu_custom_call.1} parent=1 // pred_check_branch
      %52 = sbr.rel (0) target = $region25
    $region24: #{tpu_custom_call.1} parent=1 // pred_region
      %53 = dma.done [#allocation7], 16
    $region25: #{tpu_custom_call.1} parent=1 // pred_fallthru
      _
    %p54 = scmp.eq.s32.totalorder 0, 0
    // Predicated region
    $region26: #{tpu_custom_call.1} parent=1 // pred_check
      %p55 = pneg %p54
    $region27: #{tpu_custom_call.1} parent=1 // pred_check_branch
      %57 = sbr.rel (%p55) target = $region29
    $region28: #{tpu_custom_call.1} parent=1 // pred_region
      %vm58 = vcmask 523264
      %59 = vst.msk [vmem:[#allocation2] sm:$0xff] %vm58, 0.0
      %60 = vst.msk [vmem:[#allocation2 + $0x8] sm:$0xff] %vm58, 0.0
    $region29: #{tpu_custom_call.1} parent=1 // pred_fallthru
      _
    %v61 = vld [vmem:[#allocation2] sm:$0xff]
    %v62 = vld [vmem:[#allocation2 + $0x8] sm:$0xff]
    %v63 = vld [vmem:[#allocation3] sm:$0xff]
    %v64 = vld [vmem:[#allocation3 + $0x8] sm:$0xff]
    %v65 = vld [vmem:[#allocation6] sm:$0xff]
    %v66 = vld [vmem:[#allocation6 + $0x8] sm:$0xff]
    %v67 = vld [vmem:[#allocation6 + $0x10] sm:$0xff]
    %v68 = vld [vmem:[#allocation6 + $0x18] sm:$0xff]
    %vm69 = vcmask 261120
    %v71 = vsel %vm69, %v63, 0
    %v74 = vsel %vm69, %v64, 0
    %76 = vmatprep.subr.mxu0 0.0
    %77 = vmatpush1.msra.mxu0 %v65
    %78 = vmatprep.subr.mxu0 0.0
    %79 = vmatpush1.msra.mxu0 %v66
    %80 = vmatprep.subr.mxu0 0.0
    %81 = vmatpush1.msra.mxu0 %v67
    %82 = vmatprep.subr.mxu0 0.0
    %83 = vmatpush1.msra.mxu0 %v68
    %84 = vmatprep.subr.mxu0 0.0
    %85 = vmatpush1.msra.mxu0 0.0
    %86 = vmatprep.subr.mxu0 0.0
    %87 = vmatpush1.msra.mxu0 0.0
    %88 = vmatprep.subr.mxu0 0.0
    %89 = vmatpush1.msra.mxu0 0.0
    %90 = vmatprep.subr.mxu0 0.0
    %91 = vmatpush1.msra.mxu0 0.0
    %92 = vmatprep.subr.mxu0 0.0
    %93 = vmatpush1.msra.mxu0 0.0
    %94 = vmatprep.subr.mxu0 0.0
    %95 = vmatpush1.msra.mxu0 0.0
    %96 = vmatprep.subr.mxu0 0.0
    %97 = vmatpush1.msra.mxu0 0.0
    %98 = vmatprep.subr.mxu0 0.0
    %99 = vmatpush1.msra.mxu0 0.0
    %100 = vmatprep.subr.mxu0 0.0
    %101 = vmatpush1.msra.mxu0 0.0
    %102 = vmatprep.subr.mxu0 0.0
    %103 = vmatpush1.msra.mxu0 0.0
    %104 = vmatprep.subr.mxu0 0.0
    %105 = vmatpush1.msra.mxu0 0.0
    %106 = vmatprep.subr.mxu0 0.0
    %107 = vmatpush1.msra.mxu0 0.0
    %108 = vmatprep.subr.mxu0 0.0
    %109 = vmatpush1.msra.mxu0 0.0
    %110 = vmatprep.subr.mxu0 0.0
    %111 = vmatpush1.msra.mxu0 0.0
    %112 = vmatprep.subr.mxu0 0.0
    %113 = vmatpush1.msra.mxu0 0.0
    %114 = vmatprep.subr.mxu0 0.0
    %115 = vmatpush1.msra.mxu0 0.0
    %116 = vmatprep.subr.mxu0 0.0
    %117 = vmatpush1.msra.mxu0 0.0
    %118 = vmatprep.subr.mxu0 0.0
    %119 = vmatpush1.msra.mxu0 0.0
    %120 = vmatprep.subr.mxu0 0.0
    %121 = vmatpush1.msra.mxu0 0.0
    %122 = vmatprep.subr.mxu0 0.0
    %123 = vmatpush1.msra.mxu0 0.0
    %124 = vmatprep.subr.mxu0 0.0
    %125 = vmatpush1.msra.mxu0 0.0
    %126 = vmatprep.subr.mxu0 0.0
    %127 = vmatpush1.msra.mxu0 0.0
    %128 = vmatprep.subr.mxu0 0.0
    %129 = vmatpush1.msra.mxu0 0.0
    %130 = vmatprep.subr.mxu0 0.0
    %131 = vmatpush1.msra.mxu0 0.0
    %132 = vmatprep.subr.mxu0 0.0
    %133 = vmatpush1.msra.mxu0 0.0
    %134 = vmatprep.subr.mxu0 0.0
    %135 = vmatpush1.msra.mxu0 0.0
    %136 = vmatprep.subr.mxu0 0.0
    %137 = vmatpush1.msra.mxu0 0.0
    %138 = vmatprep.subr.mxu0 0.0
    %139 = vmatpush1.msra.mxu0 0.0
    %140 = vmatprep.mubr.f32.mxu0 0.0
    %141 = vmatmul.mubr.f32.gmra.mrb[0].mxu0 %v71
    %v142 = vpop.f32.mrb[0].mxu0
    %v143 = vadd.f32 0.0, %v142
    %v144 = vpop.f32.mrb[0].mxu0
    %145 = vmatprep.mubr.f32.mxu0 0.0
    %146 = vmatmul.mubr.f32.gmra.mrb[0].mxu0 %v74
    %v147 = vpop.f32.mrb[0].mxu0
    %v148 = vadd.f32 0.0, %v147
    %v149 = vpop.f32.mrb[0].mxu0
    %150 = vdwg.mxu0
    %v151 = vadd.f32 %v61, %v143
    %v152 = vadd.f32 %v62, %v148
    %vm153 = vcmask 523264
    %154 = vst.msk [vmem:[#allocation2] sm:$0xff] %vm153, %v151
    %155 = vst.msk [vmem:[#allocation2 + $0x8] sm:$0xff] %vm153, %v152
    // Predicated region
    $region30: #{tpu_custom_call.1} parent=1 // pred_check
      %p156 = pneg %p54
    $region31: #{tpu_custom_call.1} parent=1 // pred_check_branch
      %158 = sbr.rel (%p156) target = $region33
    $region32: #{tpu_custom_call.1} parent=1 // pred_region
      %v159 = vld [vmem:[#allocation2] sm:$0xff]
      %v160 = vld [vmem:[#allocation2 + $0x8] sm:$0xff]
      %v161 = vld [vmem:[#allocation8] sm:$0x1]
      %v163 = vlaneseq
      %v164 = vshrl.u32 %v163, 7
      %v165 = vsub.s32 0, %v164
      %v166 = vrot.slane %v161, %v165
      %v168 = vadd.f32 %v159, %v166
      %v169 = vadd.f32 %v160, %v166
      %170 = vst.msk [vmem:[#allocation9] sm:$0xff] %vm153, %v168
      %171 = vst.msk [vmem:[#allocation9 + $0x8] sm:$0xff] %vm153, %v169
    $region33: #{tpu_custom_call.1} parent=1 // pred_fallthru
      _
    // Predicated region
    $region34: #{tpu_custom_call.1} parent=1 // pred_check
      _
    $region35: #{tpu_custom_call.1} parent=1 // pred_check_branch
      %173 = sbr.rel (0) target = $region37
    $region36: #{tpu_custom_call.1} parent=1 // pred_region
      %s175 = ssub.s32 256, 256
      %176 = vsyncadd [#allocation5], %s175
      %s177 = sshll.u32 [#allocation9], 4
      %s178 = int_to_ptr.vmem [resolvable:$true] %s177
      %183 = dma.vmem_to_hbm [thread:$0]  %s178, 256, %s3, [#allocation5], 128, 128, 8
    $region37: #{tpu_custom_call.1} parent=1 // pred_fallthru
      _
    // Predicated region
    $region38: #{tpu_custom_call.1} parent=1 // pred_check
      _
    $region39: #{tpu_custom_call.1} parent=1 // pred_check_branch
      %185 = sbr.rel (0) target = $region41
    $region40: #{tpu_custom_call.1} parent=1 // pred_region
      %186 = dma.done [#allocation5], 256
    $region41: #{tpu_custom_call.1} parent=1 // pred_fallthru
      _
    %187 = vsyncpa [#allocation4], 1
    %188 = vsyncpa [#allocation7], 1
    %189 = vsyncpa [#allocation5], 1

</llo_original>
